<compile_context>
chip_gen: v5e
topology: v5e:2x2
jax: 0.10.0
libtpu: 0.0.40
codegen_flags: <defaults>
</compile_context>

<pallas_src>
import functools
import math

import jax
import jax.numpy as jnp
from jax.experimental import pallas as pl
from jax.experimental.pallas import tpu as pltpu

EPS = 1e-5


def _round_up(x, m):
    return -(-x // m) * m


def _vmem_capacity_bytes():
    """Physical VMEM per core; conservative fallback (v7x: 64 MiB)."""
    try:
        info = pltpu.get_tpu_info()
        cap = getattr(info, "vmem_capacity_bytes", None)
        if cap:
            return int(cap)
    except Exception:
        pass
    return 64 << 20


def _ibn_block_kernel(x_ref, w_ref, b_ref, o_ref, *,
                      n_in_blocks, inv_hw, inv_nhw, fuse_relu):
    """One channel block (N, Ct, HW). Blocks [0, n_in_blocks) are IN, rest BN."""
    i = pl.program_id(0)

    xf = x_ref[...].astype(jnp.float32)          # (N, Ct, HW) f32 working copy
    w = w_ref[...][None, :, :]                   # (1, Ct, 1) f32
    b = b_ref[...][None, :, :]                   # (1, Ct, 1) f32

    def _apply(mu, var):
        # Folded affine, all in f32 (memory-bound kernel: VPU cost is hidden).
        a = w * jax.lax.rsqrt(jnp.maximum(var, 0.0) + EPS)
        shift = b - mu * a
        y = xf * a + shift
        if fuse_relu:
            y = jnp.maximum(y, 0.0)
        o_ref[...] = y.astype(o_ref.dtype)

    @pl.when(i < n_in_blocks)
    def _():
        # InstanceNorm2d: stats per (n, c) over HW, two-pass (f32).
        mu = jnp.sum(xf, axis=-1, keepdims=True) * inv_hw            # (N, Ct, 1)
        d = xf - mu
        var = jnp.sum(d * d, axis=-1, keepdims=True) * inv_hw        # biased
        _apply(mu, var)

    @pl.when(i >= n_in_blocks)
    def _():
        # BatchNorm2d (batch-stat forward): stats per c over (N, HW), two-pass.
        s = jnp.sum(xf, axis=-1, keepdims=True)                      # (N, Ct, 1)
        mu = jnp.sum(s, axis=0, keepdims=True) * inv_nhw             # (1, Ct, 1)
        d = xf - mu
        s2 = jnp.sum(d * d, axis=-1, keepdims=True)
        var = jnp.sum(s2, axis=0, keepdims=True) * inv_nhw           # biased
        _apply(mu, var)


def _pick_ct(half1_p, half2_p, n, hw_pad, itemsize, budget_bytes, q):
    """Channel tile: divides both (padded) halves, sublane-aligned, fits the
    per-buffer budget (padded accounting), prefers >= 8 grid steps and an even
    block count (TensorCore balance on v7x)."""
    g = math.gcd(half1_p, half2_p)
    if g == 0:
        g = max(half1_p, half2_p, q)
    c_total = half1_p + half2_p

    def padded_block_bytes(ct):
        return n * _round_up(ct, q) * hw_pad * itemsize

    divs = [d for d in range(q, g + 1, q) if g % d == 0]
    if not divs:
        divs = [g]
    fits = [d for d in divs if padded_block_bytes(d) <= budget_bytes]
    if not fits:
        fits = [min(divs)]      # budget too small for even the minimal tile

    good = [d for d in fits if (c_total // d) >= 8 and (c_total // d) % 2 == 0]
    if good:
        return max(good)
    good = [d for d in fits if (c_total // d) >= 8]
    if good:
        return max(good)
    even = [d for d in fits if (c_total // d) % 2 == 0]
    return max(even) if even else max(fits)


def ibn_forward(x_nchw, in_w, in_b, bn_w, bn_b, *,
                fuse_relu=False, block_budget_bytes=None):
    """x_nchw: (N, C, H, W). Params: 1-D of length half1 / half2 = C - half1."""
    N, C, H, W = x_nchw.shape
    half1 = C // 2
    half2 = C - half1
    HW = H * W
    dtype = x_nchw.dtype
    itemsize = jnp.dtype(dtype).itemsize
    q = 8 if itemsize >= 4 else 16            # sublane quantum
    hw_pad = _round_up(HW, 128)               # lane-padded last dim (accounting)

    # --- generation-aware VMEM budget -------------------------------------
    cap_frac = int(_vmem_capacity_bytes() * 0.85)
    if block_budget_bytes is None:
        # ~4 double-buffered tiles + f32 working set must fit under cap_frac.
        block_budget_bytes = max(1 << 20, min(16 << 20, (cap_frac - (2 << 20)) // 6))

    # --- channel padding so each half is sublane aligned --------------------
    pad1 = (-half1) % q
    pad2 = (-half2) % q
    half1_p, half2_p = half1 + pad1, half2 + pad2
    Cp = half1_p + half2_p

    x3 = x_nchw.reshape(N, C, HW)
    if pad1 or pad2:
        pieces = [x3[:, :half1]]
        if pad1:
            pieces.append(jnp.zeros((N, pad1, HW), dtype))
        pieces.append(x3[:, half1:])
        if pad2:
            pieces.append(jnp.zeros((N, pad2, HW), dtype))
        x3 = jnp.concatenate(pieces, axis=1)

    ct = _pick_ct(half1_p, half2_p, N, hw_pad, itemsize, block_budget_bytes, q)
    n_blocks = Cp // ct
    n_in_blocks = half1_p // ct

    # Per-channel affine params (IN first, then BN; padded channels -> 1 / 0).
    w_all = jnp.concatenate([
        in_w.astype(jnp.float32), jnp.ones((pad1,), jnp.float32),
        bn_w.astype(jnp.float32), jnp.ones((pad2,), jnp.float32)]).reshape(Cp, 1)
    b_all = jnp.concatenate([
        in_b.astype(jnp.float32), jnp.zeros((pad1,), jnp.float32),
        bn_b.astype(jnp.float32), jnp.zeros((pad2,), jnp.float32)]).reshape(Cp, 1)

    kernel = functools.partial(
        _ibn_block_kernel,
        n_in_blocks=n_in_blocks,
        inv_hw=1.0 / float(HW),
        inv_nhw=1.0 / float(N * HW),
        fuse_relu=fuse_relu,
    )

    # Honest (padded) VMEM accounting: 2x double-buffered in + out tiles plus
    # the in-kernel f32 working copy; capped at ~85% of physical VMEM.
    padded_block_bytes = N * ct * hw_pad * itemsize
    f32_block_bytes = N * ct * hw_pad * 4
    vmem_limit = int(min(cap_frac,
                         max(32 << 20,
                             4 * padded_block_bytes + 2 * f32_block_bytes + (2 << 20))))

    out3 = pl.pallas_call(
        kernel,
        grid=(n_blocks,),
        in_specs=[
            pl.BlockSpec((N, ct, HW), lambda i: (0, i, 0)),
            pl.BlockSpec((ct, 1), lambda i: (i, 0)),
            pl.BlockSpec((ct, 1), lambda i: (i, 0)),
        ],
        out_specs=pl.BlockSpec((N, ct, HW), lambda i: (0, i, 0)),
        out_shape=jax.ShapeDtypeStruct((N, Cp, HW), dtype),
        compiler_params=pltpu.CompilerParams(
            dimension_semantics=("parallel",),
            vmem_limit_bytes=vmem_limit,
        ),
    )(x3, w_all, b_all)

    if pad1 or pad2:
        out3 = jnp.concatenate(
            [out3[:, :half1], out3[:, half1_p:half1_p + half2]], axis=1)
    return out3.reshape(N, C, H, W)


def ibn_reference(x, in_w, in_b, bn_w, bn_b, *, fuse_relu=False):
    """Pure-JAX reference matching the PyTorch IBN module (train-mode stats)."""
    N, C, H, W = x.shape
    half1 = C // 2
    x = x.astype(jnp.float32)
    x_in, x_bn = x[:, :half1], x[:, half1:]

    mu = jnp.mean(x_in, axis=(2, 3), keepdims=True)
    var = jnp.var(x_in, axis=(2, 3), keepdims=True)
    o1 = (x_in - mu) / jnp.sqrt(var + EPS)
    o1 = o1 * in_w[None, :, None, None] + in_b[None, :, None, None]

    mu_b = jnp.mean(x_bn, axis=(0, 2, 3), keepdims=True)
    var_b = jnp.var(x_bn, axis=(0, 2, 3), keepdims=True)
    o2 = (x_bn - mu_b) / jnp.sqrt(var_b + EPS)
    o2 = o2 * bn_w[None, :, None, None] + bn_b[None, :, None, None]
    out = jnp.concatenate([o1, o2], axis=1)
    if fuse_relu:
        out = jnp.maximum(out, 0.0)
    return out


if __name__ == "__main__":
    key = jax.random.PRNGKey(0)

    def run_case(n, c, h, w, case_key, *, dtype=jnp.float32, fuse_relu=False,
                 block_budget_bytes=None, tol=1e-4):
        half1 = c // 2
        half2 = c - half1
        k_x, k_iw, k_ib, k_bw, k_bb = jax.random.split(case_key, 5)
        x = jax.random.normal(k_x, (n, c, h, w), dtype=jnp.float32).astype(dtype)
        # Deterministic, non-trivial affine params (PyTorch default would be 1/0).
        in_w = 1.0 + 0.1 * jax.random.normal(k_iw, (half1,), dtype=jnp.float32)
        in_b = 0.1 * jax.random.normal(k_ib, (half1,), dtype=jnp.float32)
        bn_w = 1.0 + 0.1 * jax.random.normal(k_bw, (half2,), dtype=jnp.float32)
        bn_b = 0.1 * jax.random.normal(k_bb, (half2,), dtype=jnp.float32)

        out = jax.block_until_ready(
            ibn_forward(x, in_w, in_b, bn_w, bn_b, fuse_relu=fuse_relu,
                        block_budget_bytes=block_budget_bytes))
        ref = jax.block_until_ready(
            ibn_reference(x, in_w, in_b, bn_w, bn_b, fuse_relu=fuse_relu))

        assert out.shape == (n, c, h, w)
        err = float(jnp.max(jnp.abs(out.astype(jnp.float32) - ref)))
        assert err < tol, f"mismatch vs reference: {err}"

    k1, k2, k3 = jax.random.split(key, 3)
    # Small shape: Ct = 8 -> one IN block + one BN block (lane-aligned HW=256).
    run_case(2, 16, 16, 16, k1)
    # Non-128-multiple spatial (14x14 = 196, the real mid-stage case) with
    # C = 64 -> Ct = 8 -> 8 grid steps (4 IN + 4 BN): exercises the pipelined,
    # padded-accounting path.
    run_case(2, 64, 14, 14, k2)
    # bf16 I/O with fused ReLU (the activation that follows bn1 in Bottleneck).
    run_case(2, 32, 8, 8, k3, dtype=jnp.bfloat16, fuse_relu=True, tol=5e-2)

    print("KERNEL_OK")
</pallas_src>

<mosaic_0001>
module attributes {stable_mosaic.version = 11 : i64} {
  func.func @_ibn_block_kernel(%arg0: i32, %arg1: memref<2x8x256xf32, #tpu.memory_space<vmem>>, %arg2: memref<8x1xf32, #tpu.memory_space<vmem>>, %arg3: memref<8x1xf32, #tpu.memory_space<vmem>>, %arg4: memref<2x8x256xf32, #tpu.memory_space<vmem>>) attributes {dimension_semantics = [#tpu.dimension_semantics<parallel>], iteration_bounds = array<i64: 2>, scalar_prefetch = 0 : i64, scratch_operands = 0 : i64, tpu.core_type = #tpu.core_type<tc>, window_params = [{transform_indices = @transform_0, window_bounds = array<i64: 2, 8, 256>}, {transform_indices = @transform_1, window_bounds = array<i64: 8, 1>}, {transform_indices = @transform_2, window_bounds = array<i64: 8, 1>}, {transform_indices = @transform_3, window_bounds = array<i64: 2, 8, 256>}]} {
    %c0 = arith.constant 0 : index
    %c0_0 = arith.constant 0 : index
    %c0_1 = arith.constant 0 : index
    %0 = vector.load %arg1[%c0, %c0_0, %c0_1] : memref<2x8x256xf32, #tpu.memory_space<vmem>>, vector<2x8x256xf32>
    %c0_2 = arith.constant 0 : index
    %c0_3 = arith.constant 0 : index
    %1 = vector.load %arg2[%c0_2, %c0_3] : memref<8x1xf32, #tpu.memory_space<vmem>>, vector<8x1xf32>
    %2 = vector.shape_cast %1 : vector<8x1xf32> to vector<1x8x1xf32>
    %c0_4 = arith.constant 0 : index
    %c0_5 = arith.constant 0 : index
    %3 = vector.load %arg3[%c0_4, %c0_5] : memref<8x1xf32, #tpu.memory_space<vmem>>, vector<8x1xf32>
    %4 = vector.shape_cast %3 : vector<8x1xf32> to vector<1x8x1xf32>
    %c1_i32 = arith.constant 1 : i32
    %5 = arith.cmpi slt, %arg0, %c1_i32 : i32
    %6 = arith.extui %5 : i1 to i32
    %c0_i32 = arith.constant 0 : i32
    %7 = arith.cmpi ne, %6, %c0_i32 : i32
    scf.if %7 {
      %cst = arith.constant dense<0.000000e+00> : vector<2x8xf32>
      %11 = vector.multi_reduction <add>, %0, %cst [2] : vector<2x8x256xf32> to vector<2x8xf32>
      %12 = vector.shape_cast %11 : vector<2x8xf32> to vector<2x8x1xf32>
      %cst_8 = arith.constant 3.906250e-03 : f32
      %13 = vector.broadcast %cst_8 : f32 to vector<2x8x1xf32>
      %14 = arith.mulf %12, %13 : vector<2x8x1xf32>
      %15 = vector.broadcast %14 : vector<2x8x1xf32> to vector<2x8x256xf32>
      %16 = arith.subf %0, %15 : vector<2x8x256xf32>
      %17 = arith.mulf %16, %16 : vector<2x8x256xf32>
      %cst_9 = arith.constant dense<0.000000e+00> : vector<2x8xf32>
      %18 = vector.multi_reduction <add>, %17, %cst_9 [2] : vector<2x8x256xf32> to vector<2x8xf32>
      %19 = vector.shape_cast %18 : vector<2x8xf32> to vector<2x8x1xf32>
      %cst_10 = arith.constant 3.906250e-03 : f32
      %20 = vector.broadcast %cst_10 : f32 to vector<2x8x1xf32>
      %21 = arith.mulf %19, %20 : vector<2x8x1xf32>
      %cst_11 = arith.constant 0.000000e+00 : f32
      %22 = vector.broadcast %cst_11 : f32 to vector<2x8x1xf32>
      %23 = arith.maximumf %21, %22 : vector<2x8x1xf32>
      %cst_12 = arith.constant 9.99999974E-6 : f32
      %24 = vector.broadcast %cst_12 : f32 to vector<2x8x1xf32>
      %25 = arith.addf %23, %24 : vector<2x8x1xf32>
      %26 = math.rsqrt %25 : vector<2x8x1xf32>
      %27 = vector.broadcast %2 : vector<1x8x1xf32> to vector<2x8x1xf32>
      %28 = arith.mulf %27, %26 : vector<2x8x1xf32>
      %29 = arith.mulf %14, %28 : vector<2x8x1xf32>
      %30 = vector.broadcast %4 : vector<1x8x1xf32> to vector<2x8x1xf32>
      %31 = arith.subf %30, %29 : vector<2x8x1xf32>
      %32 = vector.broadcast %28 : vector<2x8x1xf32> to vector<2x8x256xf32>
      %33 = arith.mulf %0, %32 : vector<2x8x256xf32>
      %34 = vector.broadcast %31 : vector<2x8x1xf32> to vector<2x8x256xf32>
      %35 = arith.addf %33, %34 : vector<2x8x256xf32>
      %c0_13 = arith.constant 0 : index
      %c0_14 = arith.constant 0 : index
      %c0_15 = arith.constant 0 : index
      %36 = vector.load %arg4[%c0_13, %c0_14, %c0_15] : memref<2x8x256xf32, #tpu.memory_space<vmem>>, vector<2x8x256xf32>
      tpu.vector_store %arg4[%c0_13, %c0_14, %c0_15], %35 {strides = array<i32>} : memref<2x8x256xf32, #tpu.memory_space<vmem>>, vector<2x8x256xf32>,
    } else {
    }
    %c1_i32_6 = arith.constant 1 : i32
    %8 = arith.cmpi sge, %arg0, %c1_i32_6 : i32
    %9 = arith.extui %8 : i1 to i32
    %c0_i32_7 = arith.constant 0 : i32
    %10 = arith.cmpi ne, %9, %c0_i32_7 : i32
    scf.if %10 {
      %cst = arith.constant dense<0.000000e+00> : vector<2x8xf32>
      %11 = vector.multi_reduction <add>, %0, %cst [2] : vector<2x8x256xf32> to vector<2x8xf32>
      %12 = vector.shape_cast %11 : vector<2x8xf32> to vector<2x8x1xf32>
      %cst_8 = arith.constant dense<0.000000e+00> : vector<8x1xf32>
      %13 = vector.multi_reduction <add>, %12, %cst_8 [0] : vector<2x8x1xf32> to vector<8x1xf32>
      %14 = vector.shape_cast %13 : vector<8x1xf32> to vector<1x8x1xf32>
      %cst_9 = arith.constant 0.001953125 : f32
      %15 = vector.broadcast %cst_9 : f32 to vector<1x8x1xf32>
      %16 = arith.mulf %14, %15 : vector<1x8x1xf32>
      %17 = vector.broadcast %16 : vector<1x8x1xf32> to vector<2x8x256xf32>
      %18 = arith.subf %0, %17 : vector<2x8x256xf32>
      %19 = arith.mulf %18, %18 : vector<2x8x256xf32>
      %cst_10 = arith.constant dense<0.000000e+00> : vector<2x8xf32>
      %20 = vector.multi_reduction <add>, %19, %cst_10 [2] : vector<2x8x256xf32> to vector<2x8xf32>
      %21 = vector.shape_cast %20 : vector<2x8xf32> to vector<2x8x1xf32>
      %cst_11 = arith.constant dense<0.000000e+00> : vector<8x1xf32>
      %22 = vector.multi_reduction <add>, %21, %cst_11 [0] : vector<2x8x1xf32> to vector<8x1xf32>
      %23 = vector.shape_cast %22 : vector<8x1xf32> to vector<1x8x1xf32>
      %cst_12 = arith.constant 0.001953125 : f32
      %24 = vector.broadcast %cst_12 : f32 to vector<1x8x1xf32>
      %25 = arith.mulf %23, %24 : vector<1x8x1xf32>
      %cst_13 = arith.constant 0.000000e+00 : f32
      %26 = vector.broadcast %cst_13 : f32 to vector<1x8x1xf32>
      %27 = arith.maximumf %25, %26 : vector<1x8x1xf32>
      %cst_14 = arith.constant 9.99999974E-6 : f32
      %28 = vector.broadcast %cst_14 : f32 to vector<1x8x1xf32>
      %29 = arith.addf %27, %28 : vector<1x8x1xf32>
      %30 = math.rsqrt %29 : vector<1x8x1xf32>
      %31 = arith.mulf %2, %30 : vector<1x8x1xf32>
      %32 = arith.mulf %16, %31 : vector<1x8x1xf32>
      %33 = arith.subf %4, %32 : vector<1x8x1xf32>
      %34 = vector.broadcast %31 : vector<1x8x1xf32> to vector<2x8x256xf32>
      %35 = arith.mulf %0, %34 : vector<2x8x256xf32>
      %36 = vector.broadcast %33 : vector<1x8x1xf32> to vector<2x8x256xf32>
      %37 = arith.addf %35, %36 : vector<2x8x256xf32>
      %c0_15 = arith.constant 0 : index
      %c0_16 = arith.constant 0 : index
      %c0_17 = arith.constant 0 : index
      %38 = vector.load %arg4[%c0_15, %c0_16, %c0_17] : memref<2x8x256xf32, #tpu.memory_space<vmem>>, vector<2x8x256xf32>
      tpu.vector_store %arg4[%c0_15, %c0_16, %c0_17], %37 {strides = array<i32>} : memref<2x8x256xf32, #tpu.memory_space<vmem>>, vector<2x8x256xf32>,
    } else {
    }
    return
  }
  func.func @transform_0(%arg0: i32) -> (i32, i32, i32) {
    %c0_i32 = arith.constant 0 : i32
    %c0_i32_0 = arith.constant 0 : i32
    %c0_i32_1 = arith.constant 0 : i32
    return %c0_i32, %arg0, %c0_i32_0 : i32, i32, i32
  }
  func.func @transform_1(%arg0: i32) -> (i32, i32) {
    %c0_i32 = arith.constant 0 : i32
    %c0_i32_0 = arith.constant 0 : i32
    return %arg0, %c0_i32 : i32, i32
  }
  func.func @transform_2(%arg0: i32) -> (i32, i32) {
    %c0_i32 = arith.constant 0 : i32
    %c0_i32_0 = arith.constant 0 : i32
    return %arg0, %c0_i32 : i32, i32
  }
  func.func @transform_3(%arg0: i32) -> (i32, i32, i32) {
    %c0_i32 = arith.constant 0 : i32
    %c0_i32_0 = arith.constant 0 : i32
    %c0_i32_1 = arith.constant 0 : i32
    return %c0_i32, %arg0, %c0_i32_0 : i32, i32, i32
  }
}

</mosaic_0001>

<llo_original>
// kernel: tpu_custom_call.1
$region0: #{tpu_custom_call.1}
  #allocation0 [shape = 'u32[]', space=smem, size = 0x4, offset = 0x4, fixed_abs, tag = 'smem constant byte address 0x4 - core index']
  #allocation1 [shape = 'u32[72,128]{1,0:T(1,128)}', space=vmem, size = 0x9000, scoped, tag = 'internal scratch']
  %s0 = inlined_call_operand.hbm [shape: f32[2,16,256], index: 0, kind: input, shape index: {}]
  %s1 = inlined_call_operand.vmem [shape: f32[16,1], index: 1, kind: input, shape index: {}]
  %s2 = inlined_call_operand.vmem [shape: f32[16,1], index: 2, kind: input, shape index: {}]
  %s3 = inlined_call_operand.hbm [shape: f32[2,16,256], index: 3, kind: output, shape index: {}]
  %s4 = sld [smem:[#allocation0]]
  $region57: #{tpu_custom_call.1} parent=0
    _
  %s6 = ssub.s32 1, %s4
  %s7 = scalar_select 0, %s6, %s4
  $region1: #{tpu_custom_call.1} parent=0
    #allocation2 [shape = 'u8[32768]{0}', space=vmem, size = 0x8000, scoped, tag = 'input window, operand 0']
    #allocation3 [shape = 's32[2]{0}', space=sflag, size = 0x8, scoped, tag = 'scoped memory for tpu_custom_call.1']
    #allocation4 [shape = 's32[2]{0}', space=sflag, size = 0x8, scoped, tag = 'scoped memory for tpu_custom_call.1']
    #allocation5 [shape = 'u8[32768]{0}', space=vmem, size = 0x8000, scoped, tag = 'output window, operand 0']
    %8 = vsyncpa [#allocation3], 0
    %s9 = scalar_lea.sflag [#allocation3], 1
    %10 = vsyncpa %s9, 0
    %11 = vsyncpa [#allocation4], 0
    %s12 = scalar_lea.sflag [#allocation4], 1
    %13 = vsyncpa %s12, 0
    loop: start=0, step=1, limit=4
    $region2: #{tpu_custom_call.1} parent=1 // loop_pre_header
      _
    $region3: #{tpu_custom_call.1} parent=1 // loop_header
      %s15 = sphi 0, %s19
      %p16 = scmp.ge.s32.totalorder %s15, 4
      %s25 = sphi 0, %s27
      %s28 = sphi 0, %s25
      %s29 = sphi 0, %s28
      %s45 = sphi 0, %s29
      %s51 = sphi 0, %s53
      %s54 = sphi 0, %s51
      %s55 = sphi 0, %s54
      %s71 = sphi 0, %s55
      %s77 = sphi 0, %s79
      %s80 = sphi 0, %s77
      %s81 = sphi 0, %s80
      %s97 = sphi 0, %s81
      %s103 = sphi 0, %s105
      %s106 = sphi 0, %s103
      %s107 = sphi 0, %s106
      %s123 = sphi 0, %s107
    $region4: #{tpu_custom_call.1} parent=1 // loop_header_branch
      %18 = sbr.rel (%p16) target = $region8
    $region5: #{tpu_custom_call.1} parent=1 // loop_body
      %s20 = ssub.s32 %s15, 1
      %s21 = ssub.s32 %s15, 2
      %s22 = sadd.s32 %s15, 1
      %s23 = ssub.s32 %s15, %s22
      %p24 = scmp.eq.s32.totalorder %s23, 0
      %s26 = sadd.s32 %s25, 1
      %s27 = scalar_select %p24, %s25, %s26
      %p30 = pneg %p24
      %p31 = scmp.eq.s32.totalorder %s15, 1
      %p32 = por %p30, %p31
      %p33 = scmp.ne.s32.totalorder %s25, %s28
      %p34 = scmp.eq.s32.totalorder %s15, 0
      %p35 = por %p33, %p34
      %p36 = scmp.ne.s32.totalorder %s25, %s28
      %p37 = scmp.eq.s32.totalorder %s20, 1
      %p38 = por %p36, %p37
      %p39 = scmp.ne.s32.totalorder %s28, %s29
      %p40 = scmp.eq.s32.totalorder %s20, 0
      %p41 = por %p39, %p40
      %p42 = scmp.ne.s32.totalorder %s28, %s29
      %p43 = scmp.eq.s32.totalorder %s21, 1
      %p44 = por %p42, %p43
      %p46 = scmp.ne.s32.totalorder %s29, %s45
      %p47 = scmp.eq.s32.totalorder %s21, 0
      %p48 = por %p46, %p47
      %s49 = ssub.s32 %s15, %s22
      %p50 = scmp.eq.s32.totalorder %s49, 0
      %s52 = sadd.s32 %s51, 1
      %s53 = scalar_select %p50, %s51, %s52
      %p56 = pneg %p50
      %p57 = scmp.eq.s32.totalorder %s15, 1
      %p58 = por %p56, %p57
      %p59 = scmp.ne.s32.totalorder %s51, %s54
      %p60 = scmp.eq.s32.totalorder %s15, 0
      %p61 = por %p59, %p60
      %p62 = scmp.ne.s32.totalorder %s51, %s54
      %p63 = scmp.eq.s32.totalorder %s20, 1
      %p64 = por %p62, %p63
      %p65 = scmp.ne.s32.totalorder %s54, %s55
      %p66 = scmp.eq.s32.totalorder %s20, 0
      %p67 = por %p65, %p66
      %p68 = scmp.ne.s32.totalorder %s54, %s55
      %p69 = scmp.eq.s32.totalorder %s21, 1
      %p70 = por %p68, %p69
      %p72 = scmp.ne.s32.totalorder %s55, %s71
      %p73 = scmp.eq.s32.totalorder %s21, 0
      %p74 = por %p72, %p73
      %s75 = ssub.s32 %s15, %s22
      %p76 = scmp.eq.s32.totalorder %s75, 0
      %s78 = sadd.s32 %s77, 1
      %s79 = scalar_select %p76, %s77, %s78
      %p82 = pneg %p76
      %p83 = scmp.eq.s32.totalorder %s15, 1
      %p84 = por %p82, %p83
      %p85 = scmp.ne.s32.totalorder %s77, %s80
      %p86 = scmp.eq.s32.totalorder %s15, 0
      %p87 = por %p85, %p86
      %p88 = scmp.ne.s32.totalorder %s77, %s80
      %p89 = scmp.eq.s32.totalorder %s20, 1
      %p90 = por %p88, %p89
      %p91 = scmp.ne.s32.totalorder %s80, %s81
      %p92 = scmp.eq.s32.totalorder %s20, 0
      %p93 = por %p91, %p92
      %p94 = scmp.ne.s32.totalorder %s80, %s81
      %p95 = scmp.eq.s32.totalorder %s21, 1
      %p96 = por %p94, %p95
      %p98 = scmp.ne.s32.totalorder %s81, %s97
      %p99 = scmp.eq.s32.totalorder %s21, 0
      %p100 = por %p98, %p99
      %s101 = ssub.s32 %s15, %s22
      %p102 = scmp.eq.s32.totalorder %s101, 0
      %s104 = sadd.s32 %s103, 1
      %s105 = scalar_select %p102, %s103, %s104
      %p108 = pneg %p102
      %p109 = scmp.eq.s32.totalorder %s15, 1
      %p110 = por %p108, %p109
      %p111 = scmp.ne.s32.totalorder %s103, %s106
      %p112 = scmp.eq.s32.totalorder %s15, 0
      %p113 = por %p111, %p112
      %p114 = scmp.ne.s32.totalorder %s103, %s106
      %p115 = scmp.eq.s32.totalorder %s20, 1
      %p116 = por %p114, %p115
      %p117 = scmp.ne.s32.totalorder %s106, %s107
      %p118 = scmp.eq.s32.totalorder %s20, 0
      %p119 = por %p117, %p118
      %p120 = scmp.ne.s32.totalorder %s106, %s107
      %p121 = scmp.eq.s32.totalorder %s21, 1
      %p122 = por %p120, %p121
      %p124 = scmp.ne.s32.totalorder %s107, %s123
      %p125 = scmp.eq.s32.totalorder %s21, 0
      %p126 = por %p124, %p125
      %p127 = scmp.le.s32.totalorder 1, %s15
      %p128 = scmp.lt.s32.totalorder %s15, 3
      %p129 = pnand %p127, %p128
      %p130 = pneg %p129
      // Predicated region
      $region9: #{tpu_custom_call.1} parent=5 // pred_check
        _
      $region10: #{tpu_custom_call.1} parent=5 // pred_check_branch
        %132 = sbr.rel (%p129) target = $region12
      $region11: #{tpu_custom_call.1} parent=5 // pred_region
        %s133 = ssub.s32 %s15, 1
      $region12: #{tpu_custom_call.1} parent=5 // pred_fallthru
        _
      %p134 = scmp.lt.s32.totalorder %s15, 2
      // Predicated region
      $region13: #{tpu_custom_call.1} parent=5 // pred_check
        %p135 = pneg %p134
      $region14: #{tpu_custom_call.1} parent=5 // pred_check_branch
        %137 = sbr.rel (%p135) target = $region16
      $region15: #{tpu_custom_call.1} parent=5 // pred_region
        // Predicated region
        $region17: #{tpu_custom_call.1} parent=15 // pred_check
          %p138 = pneg %p35
        $region18: #{tpu_custom_call.1} parent=15 // pred_check_branch
          %140 = sbr.rel (%p138) target = $region20
        $region19: #{tpu_custom_call.1} parent=15 // pred_region
          %s141 = sand.u32 %s25, 1
          %s142 = scalar_lea.sflag [#allocation3], %s141
          %s143 = sand.u32 %s25, 1
          %s144 = smul.addr %s143, 32
          %s145 = scalar_lea.vmem [#allocation2], %s144
          %147 = vsyncadd %s142, 0
          %s148 = smul.addr %s15, 2
          %s149 = smul.addr %s148, 8
          %s150 = scalar_lea.hbm %s0, %s149
          %s151 = sshll.u32 %s150, 4
          %s152 = int_to_ptr.hbm [resolvable:$true] %s151
          %s153 = sshll.u32 %s145, 4
          %s154 = int_to_ptr.vmem [resolvable:$true] %s153
          %159 = dma.hbm_to_vmem [thread:$0]  %s152, 512, %s154, %s142, 512, 256, 16
        $region20: #{tpu_custom_call.1} parent=15 // pred_fallthru
          _
        // Predicated region
        $region21: #{tpu_custom_call.1} parent=15 // pred_check
          %p160 = pneg %p61
        $region22: #{tpu_custom_call.1} parent=15 // pred_check_branch
          %162 = sbr.rel (%p160) target = $region24
        $region23: #{tpu_custom_call.1} parent=15 // pred_region
          %p163 = scmp.lt.s32.totalorder %s15, 1
          %s164 = scalar_select %p163, %s15, 1
          %s165 = smul.addr %s164, 8
          %s166 = scalar_lea.vmem %s1, %s165
        $region24: #{tpu_custom_call.1} parent=15 // pred_fallthru
          _
        // Predicated region
        $region25: #{tpu_custom_call.1} parent=15 // pred_check
          %p167 = pneg %p87
        $region26: #{tpu_custom_call.1} parent=15 // pred_check_branch
          %169 = sbr.rel (%p167) target = $region28
        $region27: #{tpu_custom_call.1} parent=15 // pred_region
          %p170 = scmp.lt.s32.totalorder %s15, 1
          %s171 = scalar_select %p170, %s15, 1
          %s172 = smul.addr %s171, 8
          %s173 = scalar_lea.vmem %s2, %s172
        $region28: #{tpu_custom_call.1} parent=15 // pred_fallthru
          _
      $region16: #{tpu_custom_call.1} parent=5 // pred_fallthru
        _
      %p174 = scmp.le.s32.totalorder 1, %s15
      %p175 = scmp.lt.s32.totalorder %s15, 3
      %p176 = pnand %p174, %p175
      %p177 = pneg %p176
      // Predicated region
      $region29: #{tpu_custom_call.1} parent=5 // pred_check
        _
      $region30: #{tpu_custom_call.1} parent=5 // pred_check_branch
        %179 = sbr.rel (%p176) target = $region32
      $region31: #{tpu_custom_call.1} parent=5 // pred_region
        %s180 = ssub.s32 %s15, 1
        %s181 = sand.u32 %s28, 1
        %s182 = scalar_lea.sflag [#allocation3], %s181
        %s183 = sand.u32 %s28, 1
        %s184 = smul.addr %s183, 32
        %s185 = scalar_lea.vmem [#allocation2], %s184
        // Predicated region
        $region33: #{tpu_custom_call.1} parent=31 // pred_check
          %p186 = pneg %p41
        $region34: #{tpu_custom_call.1} parent=31 // pred_check_branch
          %188 = sbr.rel (%p186) target = $region36
        $region35: #{tpu_custom_call.1} parent=31 // pred_region
          %190 = dma.done %s182, 512
        $region36: #{tpu_custom_call.1} parent=31 // pred_fallthru
          _
        %s191 = sand.u32 %s28, 1
        %s192 = scalar_lea.sflag [#allocation3], %s191
        %s193 = sand.u32 %s28, 1
        %s194 = smul.addr %s193, 32
        %s195 = scalar_lea.vmem [#allocation2], %s194
        %p196 = pneg %p41
        %p197 = pneg %p38
        %p198 = scmp.lt.s32.totalorder %s20, 1
        %s199 = scalar_select %p198, %s20, 1
        %s200 = smul.addr %s199, 8
        %s201 = scalar_lea.vmem %s1, %s200
        %p202 = pneg %p67
        %p203 = pneg %p64
        %p204 = scmp.lt.s32.totalorder %s20, 1
        %s205 = scalar_select %p204, %s20, 1
        %s206 = smul.addr %s205, 8
        %s207 = scalar_lea.vmem %s2, %s206
        %p208 = pneg %p93
        %p209 = pneg %p90
        %p210 = pneg %p119
        %p211 = pneg %p116
        %s212 = sand.u32 %s106, 1
        %s213 = scalar_lea.sflag [#allocation4], %s212
        %s214 = sand.u32 %s106, 1
        %s215 = smul.addr %s214, 32
        %s216 = scalar_lea.vmem [#allocation5], %s215
        %p217 = scmp.lt.s32.totalorder %s20, 1
        %s218 = scalar_select %p217, %s20, 1
        %s219 = smul.addr %s218, 8
        %s220 = scalar_lea.vmem %s1, %s219
        %p221 = scmp.lt.s32.totalorder %s20, 1
        %s222 = scalar_select %p221, %s20, 1
        %s223 = smul.addr %s222, 8
        %s224 = scalar_lea.vmem %s2, %s223
        %v225 = vld [vmem:[%s185] sm:$0xff]
        %v226 = vld [vmem:[%s185 + $0x8] sm:$0xff]
        %v227 = vld [vmem:[%s185 + $0x10] sm:$0xff]
        %v228 = vld [vmem:[%s185 + $0x18] sm:$0xff]
        %v229 = vld [vmem:[%s220] sm:$0xff]
        %v230 = vld [vmem:[%s224] sm:$0xff]
        %p231 = scmp.lt.s32.totalorder %s20, 1
        // Predicated region
        $region37: #{tpu_custom_call.1} parent=31 // pred_check
          %p232 = pneg %p231
        $region38: #{tpu_custom_call.1} parent=31 // pred_check_branch
          %234 = sbr.rel (%p232) target = $region40
        $region39: #{tpu_custom_call.1} parent=31 // pred_region
          %v235 = vadd.f32 %v225, %v226
          %236 = vadd.xlane.f32.xlu0 %v235
          %v237 = vpop.xlane.xlu0 %236
          %v238 = vadd.f32 %v227, %v228
          %239 = vadd.xlane.f32.xlu0 %v238
          %v240 = vpop.xlane.xlu0 %239
          %v241 = vmul.f32 %v237, 0.00390625
          %v242 = vmul.f32 %v240, 0.00390625
          %v243 = vsub.f32 %v225, %v241
          %v244 = vsub.f32 %v226, %v241
          %v245 = vsub.f32 %v227, %v242
          %v246 = vsub.f32 %v228, %v242
          %v247 = vmul.f32 %v243, %v243
          %v248 = vmul.f32 %v244, %v244
          %v249 = vmul.f32 %v245, %v245
          %v250 = vmul.f32 %v246, %v246
          %v251 = vadd.f32 %v247, %v248
          %252 = vadd.xlane.f32.xlu0 %v251
          %v253 = vpop.xlane.xlu0 %252
          %v254 = vadd.f32 %v249, %v250
          %255 = vadd.xlane.f32.xlu0 %v254
          %v256 = vpop.xlane.xlu0 %255
          %v257 = vmul.f32 %v253, 0.00390625
          %v258 = vmul.f32 %v256, 0.00390625
          %v259 = vmax.f32 %v257, 0.0
          %v260 = vmax.f32 %v258, 0.0
          %v261 = vadd.f32 %v259, 1e-05
          %v262 = vadd.f32 %v260, 1e-05
          %v263 = vrsqrt.pop %v261
          %v264 = vmul.f32 %v263, %v261
          %v265 = vmul.f32 %v264, %v263
          %v266 = vmul.f32 0.5, %v265
          %v267 = vsub.f32 1.5, %v266
          %v268 = vmul.f32 %v263, %v267
          %vm269 = vweird.f32 %v261
          %vm270 = vweird.f32 %v263
          %vm271 = vmor %vm269, %vm270
          %v272 = vsel %vm271, %v263, %v268
          %v273 = vrsqrt.pop %v262
          %v274 = vmul.f32 %v273, %v262
          %v275 = vmul.f32 %v274, %v273
          %v276 = vmul.f32 0.5, %v275
          %v277 = vsub.f32 1.5, %v276
          %v278 = vmul.f32 %v273, %v277
          %vm279 = vweird.f32 %v262
          %vm280 = vweird.f32 %v273
          %vm281 = vmor %vm279, %vm280
          %v282 = vsel %vm281, %v273, %v278
          %v283 = vmul.f32 %v229, %v272
          %v284 = vmul.f32 %v229, %v282
          %v285 = vmul.f32 %v241, %v283
          %v286 = vmul.f32 %v242, %v284
          %v287 = vsub.f32 %v230, %v285
          %v288 = vsub.f32 %v230, %v286
          %290 = vset.pattern.permute.xlu0 0
          %291 = vperm.xlu0 %290, %v283
          %v292 = vpop.permute.xlu0 %291
          %295 = vset.pattern.permute.xlu0 0
          %296 = vperm.xlu0 %295, %v284
          %v297 = vpop.permute.xlu0 %296
          %v299 = vmul.f32 %v225, %v292
          %v300 = vmul.f32 %v226, %v292
          %v301 = vmul.f32 %v227, %v297
          %v302 = vmul.f32 %v228, %v297
          %304 = vset.pattern.permute.xlu0 0
          %305 = vperm.xlu0 %304, %v287
          %v306 = vpop.permute.xlu0 %305
          %309 = vset.pattern.permute.xlu0 0
          %310 = vperm.xlu0 %309, %v288
          %v311 = vpop.permute.xlu0 %310
          %v313 = vadd.f32 %v299, %v306
          %v314 = vadd.f32 %v300, %v306
          %v315 = vadd.f32 %v301, %v311
          %v316 = vadd.f32 %v302, %v311
          %317 = vst [vmem:[%s216] sm:$0xff] %v313
          %318 = vst [vmem:[%s216 + $0x8] sm:$0xff] %v314
          %319 = vst [vmem:[%s216 + $0x10] sm:$0xff] %v315
          %320 = vst [vmem:[%s216 + $0x18] sm:$0xff] %v316
        $region40: #{tpu_custom_call.1} parent=31 // pred_fallthru
          _
        %p321 = scmp.ge.s32.totalorder %s20, 1
        // Predicated region
        $region41: #{tpu_custom_call.1} parent=31 // pred_check
          %p322 = pneg %p321
        $region42: #{tpu_custom_call.1} parent=31 // pred_check_branch
          %324 = sbr.rel (%p322) target = $region44
        $region43: #{tpu_custom_call.1} parent=31 // pred_region
          %v325 = vadd.f32 %v225, %v226
          %326 = vadd.xlane.f32.xlu0 %v325
          %v327 = vpop.xlane.xlu0 %326
          %v328 = vadd.f32 %v227, %v228
          %329 = vadd.xlane.f32.xlu0 %v328
          %v330 = vpop.xlane.xlu0 %329
          %v331 = vadd.f32 %v327, %v330
          %v332 = vmul.f32 %v331, 0.001953125
          %v333 = vsub.f32 %v225, %v332
          %v334 = vsub.f32 %v226, %v332
          %v335 = vsub.f32 %v227, %v332
          %v336 = vsub.f32 %v228, %v332
          %v337 = vmul.f32 %v333, %v333
          %v338 = vmul.f32 %v334, %v334
          %v339 = vmul.f32 %v335, %v335
          %v340 = vmul.f32 %v336, %v336
          %v341 = vadd.f32 %v337, %v338
          %342 = vadd.xlane.f32.xlu0 %v341
          %v343 = vpop.xlane.xlu0 %342
          %v344 = vadd.f32 %v339, %v340
          %345 = vadd.xlane.f32.xlu0 %v344
          %v346 = vpop.xlane.xlu0 %345
          %v347 = vadd.f32 %v343, %v346
          %v348 = vmul.f32 %v347, 0.001953125
          %v349 = vmax.f32 %v348, 0.0
          %v350 = vadd.f32 %v349, 1e-05
          %v351 = vrsqrt.pop %v350
          %v352 = vmul.f32 %v351, %v350
          %v353 = vmul.f32 %v352, %v351
          %v354 = vmul.f32 0.5, %v353
          %v355 = vsub.f32 1.5, %v354
          %v356 = vmul.f32 %v351, %v355
          %vm357 = vweird.f32 %v350
          %vm358 = vweird.f32 %v351
          %vm359 = vmor %vm357, %vm358
          %v360 = vsel %vm359, %v351, %v356
          %v361 = vmul.f32 %v229, %v360
          %v362 = vmul.f32 %v332, %v361
          %v363 = vsub.f32 %v230, %v362
          %365 = vset.pattern.permute.xlu0 0
          %366 = vperm.xlu0 %365, %v361
          %v367 = vpop.permute.xlu0 %366
          %v369 = vmul.f32 %v225, %v367
          %v370 = vmul.f32 %v226, %v367
          %v371 = vmul.f32 %v227, %v367
          %v372 = vmul.f32 %v228, %v367
          %374 = vset.pattern.permute.xlu0 0
          %375 = vperm.xlu0 %374, %v363
          %v376 = vpop.permute.xlu0 %375
          %v378 = vadd.f32 %v369, %v376
          %v379 = vadd.f32 %v370, %v376
          %v380 = vadd.f32 %v371, %v376
          %v381 = vadd.f32 %v372, %v376
          %382 = vst [vmem:[%s216] sm:$0xff] %v378
          %383 = vst [vmem:[%s216 + $0x8] sm:$0xff] %v379
          %384 = vst [vmem:[%s216 + $0x10] sm:$0xff] %v380
          %385 = vst [vmem:[%s216 + $0x18] sm:$0xff] %v381
        $region44: #{tpu_custom_call.1} parent=31 // pred_fallthru
          _
        %s386 = sand.u32 %s106, 1
        %s387 = scalar_lea.sflag [#allocation4], %s386
        %s388 = sand.u32 %s106, 1
        %s389 = smul.addr %s388, 32
        %s390 = scalar_lea.vmem [#allocation5], %s389
        // Predicated region
        $region45: #{tpu_custom_call.1} parent=31 // pred_check
          %p391 = pneg %p116
        $region46: #{tpu_custom_call.1} parent=31 // pred_check_branch
          %393 = sbr.rel (%p391) target = $region48
        $region47: #{tpu_custom_call.1} parent=31 // pred_region
          %395 = vsyncadd %s387, 0
          %s396 = smul.addr %s20, 2
          %s397 = smul.addr %s396, 8
          %s398 = scalar_lea.hbm %s3, %s397
          %s399 = sshll.u32 %s390, 4
          %s400 = int_to_ptr.vmem [resolvable:$true] %s399
          %s401 = sshll.u32 %s398, 4
          %s402 = int_to_ptr.hbm [resolvable:$true] %s401
          %407 = dma.vmem_to_hbm [thread:$0]  %s400, 512, %s402, %s387, 256, 512, 16
        $region48: #{tpu_custom_call.1} parent=31 // pred_fallthru
          _
      $region32: #{tpu_custom_call.1} parent=5 // pred_fallthru
        _
      %p408 = scmp.le.s32.totalorder 2, %s15
      // Predicated region
      $region49: #{tpu_custom_call.1} parent=5 // pred_check
        %p409 = pneg %p408
      $region50: #{tpu_custom_call.1} parent=5 // pred_check_branch
        %411 = sbr.rel (%p409) target = $region52
      $region51: #{tpu_custom_call.1} parent=5 // pred_region
        %s412 = ssub.s32 %s15, 2
        // Predicated region
        $region53: #{tpu_custom_call.1} parent=51 // pred_check
          %p413 = pneg %p122
        $region54: #{tpu_custom_call.1} parent=51 // pred_check_branch
          %415 = sbr.rel (%p413) target = $region56
        $region55: #{tpu_custom_call.1} parent=51 // pred_region
          %s416 = sand.u32 %s107, 1
          %s417 = scalar_lea.sflag [#allocation4], %s416
          %s418 = sand.u32 %s107, 1
          %s419 = smul.addr %s418, 32
          %s420 = scalar_lea.vmem [#allocation5], %s419
          %422 = dma.done %s417, 512
        $region56: #{tpu_custom_call.1} parent=51 // pred_fallthru
          _
      $region52: #{tpu_custom_call.1} parent=5 // pred_fallthru
        _
    $region6: #{tpu_custom_call.1} parent=1 // loop_footer
      %s19 = sadd.s32 1, %s15
    $region7: #{tpu_custom_call.1} parent=1 // loop_footer_branch
      %14 = sbr.rel target = $region3
    $region8: #{tpu_custom_call.1} parent=1 // loop_exit
      _
    %423 = vsyncpa [#allocation3], 1
    %s424 = scalar_lea.sflag [#allocation3], 1
    %425 = vsyncpa %s424, 1
    %426 = vsyncpa [#allocation4], 1
    %s427 = scalar_lea.sflag [#allocation4], 1
    %428 = vsyncpa %s427, 1

</llo_original>
